<compile_context>
chip_gen: v7x
topology: tpu7x:2x2x1
jax: 0.10.0
libtpu: 0.0.40
codegen_flags: <defaults>
</compile_context>

<pallas_src>
import functools

import jax
import jax.numpy as jnp
from jax.experimental import pallas as pl
from jax.experimental.pallas import tpu as pltpu


def _round_up(x, m):
    return ((x + m - 1) // m) * m


def _apply_activation(y, activation):
    if activation == "relu":
        return jnp.maximum(y, 0.0)
    if activation == "sigmoid":
        return jax.nn.sigmoid(y)
    if activation == "linear":
        return y
    # TODO(synk): Dice / PReLU activations (learned params) not implemented.
    raise NotImplementedError(f"activation '{activation}' not supported")


# ------------------------------ kernels -------------------------------------


def _fused_mlp_kernel(*refs, num_layers, activation):
    """All layers in one kernel; intermediate activations never touch HBM.

    refs = (x_ref, w0_ref, b0_ref, ..., w{L-1}_ref, b{L-1}_ref, o_ref)
      x_ref : (TM, D0_pad) f32 activation tile for this grid step
      wL_ref: (DL_pad, DL+1_pad) pre-transposed, pre-padded weights (f32|bf16),
              resident in VMEM across all grid steps (single-buffered)
      bL_ref: (1, DL+1_pad) f32 bias
      o_ref : (TM, Dlast_pad) f32 output tile (the only HBM write)
    """
    x_ref = refs[0]
    o_ref = refs[1 + 2 * num_layers]
    h = x_ref[...]
    for layer in range(num_layers):
        w_ref = refs[1 + 2 * layer]
        b_ref = refs[2 + 2 * layer]
        y = jnp.dot(h.astype(w_ref.dtype), w_ref[...],
                    preferred_element_type=jnp.float32)  # f32 MXU accumulation
        y = y + b_ref[...]                               # f32 epilogue
        h = _apply_activation(y, activation)
    o_ref[...] = h.astype(o_ref.dtype)


def _layer_kernel(x_ref, w_ref, b_ref, o_ref, acc_ref, *, activation):
    """Per-layer fallback: tiled matmul over (M, N, K) grid with f32 acc."""

    @pl.when(pl.program_id(2) == 0)
    def _():
        acc_ref[...] = jnp.zeros_like(acc_ref)

    acc_ref[...] += jnp.dot(x_ref[...].astype(w_ref.dtype), w_ref[...],
                            preferred_element_type=jnp.float32)

    @pl.when(pl.program_id(2) == pl.num_programs(2) - 1)
    def _():
        y = acc_ref[...] + b_ref[...]
        o_ref[...] = _apply_activation(y, activation).astype(o_ref.dtype)


# --------------------------- parameter handling ------------------------------


def init_dnn_params(key, inputs_dim, hidden_units, init_std=1e-4):
    """Mirror PyTorch init: W ~ N(0, init_std), b ~ U(+-1/sqrt(fan_in)).

    Weights are stored ALREADY TRANSPOSED as (d_in, d_out) so the forward
    pass needs no transpose op.
    """
    if len(hidden_units) == 0:
        raise ValueError("hidden_units is empty!!")
    dims = [inputs_dim] + list(hidden_units)
    params = []
    for i in range(len(dims) - 1):
        key, kw, kb = jax.random.split(key, 3)
        d_in, d_out = dims[i], dims[i + 1]
        w_t = init_std * jax.random.normal(kw, (d_in, d_out), jnp.float32)
        bound = 1.0 / float(d_in) ** 0.5
        b = jax.random.uniform(kb, (d_out,), minval=-bound, maxval=bound,
                               dtype=jnp.float32)
        params.append((w_t, b))
    return params


def prepare_dnn_params(params, compute_dtype=jnp.float32):
    """One-time prep (hoisted out of the forward pass).

    Zero-pads every feature dim to a multiple of 128 (lane-dense, full MXU
    tiles — numerically exact since padded rows/cols/bias lanes are zero) and
    casts weights to the MXU feed dtype (f32 or bf16). Biases stay f32.
    """
    dims = [int(params[0][0].shape[0])] + [int(w.shape[1]) for (w, _) in params]
    dims_pad = [_round_up(d, 128) for d in dims]
    weights_p, biases_p = [], []
    for layer, (w_t, b) in enumerate(params):
        di, do = int(w_t.shape[0]), int(w_t.shape[1])
        w_p = jnp.zeros((dims_pad[layer], dims_pad[layer + 1]), jnp.float32)
        w_p = w_p.at[:di, :do].set(w_t.astype(jnp.float32)).astype(compute_dtype)
        b_p = jnp.zeros((1, dims_pad[layer + 1]), jnp.float32)
        b_p = b_p.at[0, :do].set(b.astype(jnp.float32))
        weights_p.append(w_p)
        biases_p.append(b_p)
    return weights_p, biases_p, tuple(dims)


def _vmem_budget_bytes():
    """Generation-aware VMEM budget: ~80% of physical capacity."""
    try:
        cap = int(pltpu.get_tpu_info().vmem_capacity_bytes)
    except Exception:
        cap = 64 << 20  # conservative default = smallest generation (v7x)
    return (cap * 4) // 5


# ------------------------------- forward -------------------------------------


@functools.partial(
    jax.jit,
    static_argnames=("logical_out_dim", "activation", "block_m",
                     "force_per_layer"))
def dnn_forward(x, weights_p, biases_p, *, logical_out_dim,
                activation="relu", block_m=None, force_per_layer=False):
    """Forward pass: stack of (Linear -> activation).

    dropout_rate=0 and use_bn=False (module defaults) => both are identity.
    x          : (B, d_in) float32 (logical, unpadded)
    weights_p  : padded (d_in_pad, d_out_pad) weights from prepare_dnn_params
    biases_p   : padded (1, d_out_pad) f32 biases from prepare_dnn_params
    """
    act = str(activation).lower()
    B, d_in = int(x.shape[0]), int(x.shape[1])
    num_layers = len(weights_p)
    dims_pad = [int(weights_p[0].shape[0])] + [int(w.shape[1]) for w in weights_p]
    d0_pad, dl_pad, max_pad = dims_pad[0], dims_pad[-1], max(dims_pad)

    budget = _vmem_budget_bytes()

    # Cap the batch tile so the "parallel" axis has >= 2 steps when B allows
    # (uses both TensorCores on v7x; neutral on v5e/v6e single-TC chips).
    tm_cap = _round_up(B, 8)
    if B > 8:
        tm_cap = min(tm_cap, _round_up(pl.cdiv(B, 2), 8))

    w_bytes = sum(int(w.size) * w.dtype.itemsize for w in weights_p)  # Buffered(1)
    b_bytes = sum(int(b.size) * 4 for b in biases_p)

    def _fused_footprint(tm):
        io = 2 * tm * d0_pad * 4 + 2 * tm * dl_pad * 4  # double-buffered x/out tiles
        tmp = 4 * tm * max_pad * 4                      # live h / y / cast temporaries
        return w_bytes + b_bytes + io + tmp

    candidates = ((block_m,) if block_m is not None
                  else (1024, 512, 256, 128, 64, 32, 16, 8))
    tm = None
    for c in candidates:
        c = _round_up(min(int(c), tm_cap), 8)
        if _fused_footprint(c) <= budget:
            tm = c
            break

    if tm is not None and not force_per_layer:
        # ---------------- fused, weights-resident fast path ----------------
        grid_m = pl.cdiv(B, tm)
        b_pad = grid_m * tm
        x_p = jnp.zeros((b_pad, d0_pad), jnp.float32)
        x_p = x_p.at[:B, :d_in].set(x.astype(jnp.float32))

        in_specs = [pl.BlockSpec((tm, d0_pad), lambda i: (i, 0))]
        flat_inputs = [x_p]
        for w_p, b_p in zip(weights_p, biases_p):
            # Constant index_map -> single-buffer the resident weights/biases.
            in_specs.append(pl.BlockSpec(w_p.shape, lambda i: (0, 0),
                                         pipeline_mode=pl.Buffered(1)))
            in_specs.append(pl.BlockSpec(b_p.shape, lambda i: (0, 0),
                                         pipeline_mode=pl.Buffered(1)))
            flat_inputs += [w_p, b_p]

        out_p = pl.pallas_call(
            functools.partial(_fused_mlp_kernel, num_layers=num_layers,
                              activation=act),
            out_shape=jax.ShapeDtypeStruct((b_pad, dl_pad), jnp.float32),
            grid=(grid_m,),
            in_specs=in_specs,
            out_specs=pl.BlockSpec((tm, dl_pad), lambda i: (i, 0)),
            compiler_params=pltpu.CompilerParams(
                dimension_semantics=("parallel",),
                vmem_limit_bytes=budget),
        )(*flat_inputs)
        # TODO(synk): for very narrow final layers + large B, emitting the
        # output at logical lane width (masked vst) may beat this lane-dense
        # store + XLA slice; measure both.
        return out_p[:B, :logical_out_dim]

    # -------- per-layer fallback (weights do not fit VMEM-resident) ---------
    tm_f = _round_up(min(256, tm_cap), 8)
    grid_m = pl.cdiv(B, tm_f)
    b_pad = grid_m * tm_f

    def _pick_tile(dim_pad, cap=512):
        for t in (512, 384, 256, 128):
            if t <= cap and dim_pad % t == 0:
                return t
        return 128

    h = jnp.zeros((b_pad, d0_pad), jnp.float32)
    h = h.at[:B, :d_in].set(x.astype(jnp.float32))
    for layer in range(num_layers):
        w_p, b_p = weights_p[layer], biases_p[layer]
        kpad, npad = int(w_p.shape[0]), int(w_p.shape[1])
        tk, tn = _pick_tile(kpad), _pick_tile(npad)
        h = pl.pallas_call(
            functools.partial(_layer_kernel, activation=act),
            out_shape=jax.ShapeDtypeStruct((b_pad, npad), jnp.float32),
            grid=(grid_m, npad // tn, kpad // tk),
            in_specs=[pl.BlockSpec((tm_f, tk), lambda i, j, k: (i, k)),
                      pl.BlockSpec((tk, tn), lambda i, j, k: (k, j)),
                      pl.BlockSpec((1, tn), lambda i, j, k: (0, j))],
            out_specs=pl.BlockSpec((tm_f, tn), lambda i, j, k: (i, j)),
            scratch_shapes=[pltpu.VMEM((tm_f, tn), jnp.float32)],
            compiler_params=pltpu.CompilerParams(
                dimension_semantics=("parallel", "parallel", "arbitrary"),
                vmem_limit_bytes=budget),
        )(h, w_p, b_p)
    return h[:B, :logical_out_dim]


# --------------------------------- demo --------------------------------------

if __name__ == "__main__":
    key = jax.random.PRNGKey(0)
    inputs_dim, hidden_units = 32, (64, 32)
    k_in, k_params = jax.random.split(key)

    params = init_dnn_params(k_params, inputs_dim, hidden_units)

    def ref_forward(xx):
        h = xx
        for (w_t, b) in params:
            h = jnp.maximum(h @ w_t + b, 0.0)
        return h

    # f32 path (exact PyTorch semantics); params prepared ONCE.
    w_f32, b_f32, dims = prepare_dnn_params(params, jnp.float32)
    out_dim = dims[-1]

    for batch in (8, 13, 64):
        x = jax.random.normal(jax.random.fold_in(k_in, batch),
                              (batch, inputs_dim), jnp.float32)
        out = jax.block_until_ready(
            dnn_forward(x, w_f32, b_f32, logical_out_dim=out_dim))
        assert out.shape == (batch, out_dim), out.shape
        assert jnp.all(jnp.isfinite(out))
        ref = ref_forward(x)
        assert jnp.allclose(out, ref, rtol=1e-5, atol=1e-5), \
            float(jnp.max(jnp.abs(out - ref)))

    # Exercise the per-layer (M,N,K)-tiled fallback path as well.
    x = jax.random.normal(k_in, (16, inputs_dim), jnp.float32)
    out_pl = jax.block_until_ready(
        dnn_forward(x, w_f32, b_f32, logical_out_dim=out_dim,
                    force_per_layer=True))
    assert jnp.allclose(out_pl, ref_forward(x), rtol=1e-5, atol=1e-5)

    # bf16-fed MXU path: weights padded+cast ONCE; f32 accumulation/epilogue.
    w_bf16, b_bf16, _ = prepare_dnn_params(params, jnp.bfloat16)
    out_bf = jax.block_until_ready(
        dnn_forward(x, w_bf16, b_bf16, logical_out_dim=out_dim))
    assert out_bf.shape == (16, out_dim)
    assert jnp.allclose(out_bf, ref_forward(x), rtol=2e-2, atol=2e-2)

    print("KERNEL_OK")
</pallas_src>

<mosaic_0001>
module attributes {stable_mosaic.version = 11 : i64} {
  func.func @_fused_mlp_kernel(%arg0: i32, %arg1: memref<8x128xf32, #tpu.memory_space<vmem>>, %arg2: memref<128x128xf32, #tpu.memory_space<vmem>>, %arg3: memref<1x128xf32, #tpu.memory_space<vmem>>, %arg4: memref<128x128xf32, #tpu.memory_space<vmem>>, %arg5: memref<1x128xf32, #tpu.memory_space<vmem>>, %arg6: memref<8x128xf32, #tpu.memory_space<vmem>>) attributes {dimension_semantics = [#tpu.dimension_semantics<parallel>], iteration_bounds = array<i64: 1>, scalar_prefetch = 0 : i64, scratch_operands = 0 : i64, tpu.core_type = #tpu.core_type<tc>, window_params = [{transform_indices = @transform_0, window_bounds = array<i64: 8, 128>}, {pipeline_mode = #tpu.pipeline_mode<synchronous>, transform_indices = @transform_1, window_bounds = array<i64: 128, 128>}, {pipeline_mode = #tpu.pipeline_mode<synchronous>, transform_indices = @transform_2, window_bounds = array<i64: 1, 128>}, {pipeline_mode = #tpu.pipeline_mode<synchronous>, transform_indices = @transform_3, window_bounds = array<i64: 128, 128>}, {pipeline_mode = #tpu.pipeline_mode<synchronous>, transform_indices = @transform_4, window_bounds = array<i64: 1, 128>}, {transform_indices = @transform_5, window_bounds = array<i64: 8, 128>}]} {
    %c0 = arith.constant 0 : index
    %c0_0 = arith.constant 0 : index
    %0 = vector.load %arg1[%c0, %c0_0] : memref<8x128xf32, #tpu.memory_space<vmem>>, vector<8x128xf32>
    %c0_1 = arith.constant 0 : index
    %c0_2 = arith.constant 0 : index
    %1 = vector.load %arg2[%c0_1, %c0_2] : memref<128x128xf32, #tpu.memory_space<vmem>>, vector<128x128xf32>
    %cst = arith.constant dense<0.000000e+00> : vector<8x128xf32>
    %2 = tpu.matmul %0, %1, %cst {dimension_numbers = #tpu.dot_dimension_numbers<[1], [0], [0], [1], [0, 0, 1, 1], [], []>} : vector<8x128xf32>, vector<128x128xf32>, vector<8x128xf32> -> vector<8x128xf32>
    %c0_3 = arith.constant 0 : index
    %c0_4 = arith.constant 0 : index
    %3 = vector.load %arg3[%c0_3, %c0_4] : memref<1x128xf32, #tpu.memory_space<vmem>>, vector<1x128xf32>
    %4 = vector.broadcast %3 : vector<1x128xf32> to vector<8x128xf32>
    %5 = arith.addf %2, %4 : vector<8x128xf32>
    %cst_5 = arith.constant 0.000000e+00 : f32
    %6 = vector.broadcast %cst_5 : f32 to vector<8x128xf32>
    %7 = arith.maximumf %5, %6 : vector<8x128xf32>
    %c0_6 = arith.constant 0 : index
    %c0_7 = arith.constant 0 : index
    %8 = vector.load %arg4[%c0_6, %c0_7] : memref<128x128xf32, #tpu.memory_space<vmem>>, vector<128x128xf32>
    %cst_8 = arith.constant dense<0.000000e+00> : vector<8x128xf32>
    %9 = tpu.matmul %7, %8, %cst_8 {dimension_numbers = #tpu.dot_dimension_numbers<[1], [0], [0], [1], [0, 0, 1, 1], [], []>} : vector<8x128xf32>, vector<128x128xf32>, vector<8x128xf32> -> vector<8x128xf32>
    %c0_9 = arith.constant 0 : index
    %c0_10 = arith.constant 0 : index
    %10 = vector.load %arg5[%c0_9, %c0_10] : memref<1x128xf32, #tpu.memory_space<vmem>>, vector<1x128xf32>
    %11 = vector.broadcast %10 : vector<1x128xf32> to vector<8x128xf32>
    %12 = arith.addf %9, %11 : vector<8x128xf32>
    %cst_11 = arith.constant 0.000000e+00 : f32
    %13 = vector.broadcast %cst_11 : f32 to vector<8x128xf32>
    %14 = arith.maximumf %12, %13 : vector<8x128xf32>
    %c0_12 = arith.constant 0 : index
    %c0_13 = arith.constant 0 : index
    %15 = vector.load %arg6[%c0_12, %c0_13] : memref<8x128xf32, #tpu.memory_space<vmem>>, vector<8x128xf32>
    tpu.vector_store %arg6[%c0_12, %c0_13], %14 {strides = array<i32>} : memref<8x128xf32, #tpu.memory_space<vmem>>, vector<8x128xf32>,
    return
  }
  func.func @transform_0(%arg0: i32) -> (i32, i32) {
    %c0_i32 = arith.constant 0 : i32
    %c0_i32_0 = arith.constant 0 : i32
    return %arg0, %c0_i32 : i32, i32
  }
  func.func @transform_1(%arg0: i32) -> (i32, i32) {
    %c0_i32 = arith.constant 0 : i32
    %c0_i32_0 = arith.constant 0 : i32
    %c0_i32_1 = arith.constant 0 : i32
    return %c0_i32, %c0_i32_0 : i32, i32
  }
  func.func @transform_2(%arg0: i32) -> (i32, i32) {
    %c0_i32 = arith.constant 0 : i32
    %c0_i32_0 = arith.constant 0 : i32
    %c0_i32_1 = arith.constant 0 : i32
    return %c0_i32, %c0_i32_0 : i32, i32
  }
  func.func @transform_3(%arg0: i32) -> (i32, i32) {
    %c0_i32 = arith.constant 0 : i32
    %c0_i32_0 = arith.constant 0 : i32
    %c0_i32_1 = arith.constant 0 : i32
    return %c0_i32, %c0_i32_0 : i32, i32
  }
  func.func @transform_4(%arg0: i32) -> (i32, i32) {
    %c0_i32 = arith.constant 0 : i32
    %c0_i32_0 = arith.constant 0 : i32
    %c0_i32_1 = arith.constant 0 : i32
    return %c0_i32, %c0_i32_0 : i32, i32
  }
  func.func @transform_5(%arg0: i32) -> (i32, i32) {
    %c0_i32 = arith.constant 0 : i32
    %c0_i32_0 = arith.constant 0 : i32
    return %arg0, %c0_i32 : i32, i32
  }
}

</mosaic_0001>

<llo_original>
// kernel: dnn_forward.1
$region0: #{dnn_forward.1}
  #allocation0 [shape = 'u32[]', space=smem, size = 0x4, offset = 0x4, fixed_abs, tag = 'smem constant byte address 0x4 - core index']
  #allocation1 [shape = 'u32[144,128]{1,0:T(1,128)}', space=vmem, size = 0x12000, scoped, tag = 'internal scratch']
  %s0 = inlined_call_operand.vmem [shape: f32[8,128], index: 0, kind: input, shape index: {}]
  %s1 = inlined_call_operand.hbm [shape: f32[128,128], index: 1, kind: input, shape index: {}]
  %s2 = inlined_call_operand.vmem [shape: f32[1,128], index: 2, kind: input, shape index: {}]
  %s3 = inlined_call_operand.hbm [shape: f32[128,128], index: 3, kind: input, shape index: {}]
  %s4 = inlined_call_operand.vmem [shape: f32[1,128], index: 4, kind: input, shape index: {}]
  %s5 = inlined_call_operand.hbm [shape: f32[8,128], index: 5, kind: output, shape index: {}]
  %s6 = sld [smem:[#allocation0]]
  $region38: #{dnn_forward.1} parent=0
    _
  %s8 = ssub.s32 1, %s6
  %s9 = scalar_select 0, %s8, %s6
  $region1: #{dnn_forward.1} parent=0
    #allocation2 [shape = 'u8[65536]{0}', space=vmem, size = 0x10000, scoped, tag = 'input window, operand 1, single buffered']
    #allocation3 [shape = 's32[1]{0}', space=sflag, size = 0x4, scoped, tag = 'scoped memory for dnn_forward.1']
    #allocation4 [shape = 's32[1]{0}', space=sflag, size = 0x4, scoped, tag = 'scoped memory for dnn_forward.1']
    #allocation5 [shape = 'u8[65536]{0}', space=vmem, size = 0x10000, scoped, tag = 'input window, operand 3, single buffered']
    #allocation6 [shape = 's32[1]{0}', space=sflag, size = 0x4, scoped, tag = 'scoped memory for dnn_forward.1']
    #allocation7 [shape = 'u8[4096]{0}', space=vmem, size = 0x1000, scoped, tag = 'output window, operand 0, single buffered']
    %10 = vsyncpa [#allocation3], 0
    %11 = vsyncpa [#allocation6], 0
    %12 = vsyncpa [#allocation4], 0
    // Predicated region
    $region2: #{dnn_forward.1} parent=1 // pred_check
      _
    $region3: #{dnn_forward.1} parent=1 // pred_check_branch
      %14 = sbr.rel (0) target = $region5
    $region4: #{dnn_forward.1} parent=1 // pred_region
      _
    $region5: #{dnn_forward.1} parent=1 // pred_fallthru
      _
    // Predicated region
    $region6: #{dnn_forward.1} parent=1 // pred_check
      _
    $region7: #{dnn_forward.1} parent=1 // pred_check_branch
      %16 = sbr.rel (0) target = $region9
    $region8: #{dnn_forward.1} parent=1 // pred_region
      %s18 = ssub.s32 2048, 2048
      %19 = vsyncadd [#allocation3], %s18
      %s20 = sshll.u32 [#allocation2], 4
      %s21 = int_to_ptr.vmem [resolvable:$true] %s20
      %26 = dma.hbm_to_vmem [thread:$0]  %s1, 2048, %s21, [#allocation3], 128, 128, 8
    $region9: #{dnn_forward.1} parent=1 // pred_fallthru
      _
    // Predicated region
    $region10: #{dnn_forward.1} parent=1 // pred_check
      _
    $region11: #{dnn_forward.1} parent=1 // pred_check_branch
      %28 = sbr.rel (0) target = $region13
    $region12: #{dnn_forward.1} parent=1 // pred_region
      _
    $region13: #{dnn_forward.1} parent=1 // pred_fallthru
      _
    // Predicated region
    $region14: #{dnn_forward.1} parent=1 // pred_check
      _
    $region15: #{dnn_forward.1} parent=1 // pred_check_branch
      %30 = sbr.rel (0) target = $region17
    $region16: #{dnn_forward.1} parent=1 // pred_region
      %s32 = ssub.s32 2048, 2048
      %33 = vsyncadd [#allocation6], %s32
      %s34 = sshll.u32 [#allocation5], 4
      %s35 = int_to_ptr.vmem [resolvable:$true] %s34
      %40 = dma.hbm_to_vmem [thread:$0]  %s3, 2048, %s35, [#allocation6], 128, 128, 8
    $region17: #{dnn_forward.1} parent=1 // pred_fallthru
      _
    // Predicated region
    $region18: #{dnn_forward.1} parent=1 // pred_check
      _
    $region19: #{dnn_forward.1} parent=1 // pred_check_branch
      %42 = sbr.rel (0) target = $region21
    $region20: #{dnn_forward.1} parent=1 // pred_region
      _
    $region21: #{dnn_forward.1} parent=1 // pred_fallthru
      _
    // Predicated region
    $region22: #{dnn_forward.1} parent=1 // pred_check
      _
    $region23: #{dnn_forward.1} parent=1 // pred_check_branch
      %44 = sbr.rel (0) target = $region25
    $region24: #{dnn_forward.1} parent=1 // pred_region
      %45 = dma.done [#allocation3], 2048
    $region25: #{dnn_forward.1} parent=1 // pred_fallthru
      _
    // Predicated region
    $region26: #{dnn_forward.1} parent=1 // pred_check
      _
    $region27: #{dnn_forward.1} parent=1 // pred_check_branch
      %47 = sbr.rel (0) target = $region29
    $region28: #{dnn_forward.1} parent=1 // pred_region
      %48 = dma.done [#allocation6], 2048
    $region29: #{dnn_forward.1} parent=1 // pred_fallthru
      _
    %v49 = vld [vmem:[%s0] sm:$0xff]
    %v50 = vld [vmem:[#allocation2] sm:$0xff]
    %v51 = vld [vmem:[#allocation2 + $0x8] sm:$0xff]
    %v52 = vld [vmem:[#allocation2 + $0x10] sm:$0xff]
    %v53 = vld [vmem:[#allocation2 + $0x18] sm:$0xff]
    %v54 = vld [vmem:[#allocation2 + $0x20] sm:$0xff]
    %v55 = vld [vmem:[#allocation2 + $0x28] sm:$0xff]
    %v56 = vld [vmem:[#allocation2 + $0x30] sm:$0xff]
    %v57 = vld [vmem:[#allocation2 + $0x38] sm:$0xff]
    %v58 = vld [vmem:[#allocation2 + $0x40] sm:$0xff]
    %v59 = vld [vmem:[#allocation2 + $0x48] sm:$0xff]
    %v60 = vld [vmem:[#allocation2 + $0x50] sm:$0xff]
    %v61 = vld [vmem:[#allocation2 + $0x58] sm:$0xff]
    %v62 = vld [vmem:[#allocation2 + $0x60] sm:$0xff]
    %v63 = vld [vmem:[#allocation2 + $0x68] sm:$0xff]
    %v64 = vld [vmem:[#allocation2 + $0x70] sm:$0xff]
    %v65 = vld [vmem:[#allocation2 + $0x78] sm:$0xff]
    %v66 = vld [vmem:[%s2] sm:$0x1]
    %v68 = vlaneseq
    %v69 = vshrl.u32 %v68, 7
    %v70 = vsub.s32 0, %v69
    %v71 = vrot.slane %v66, %v70
    %73 = vmatprep.subr.mxu0 0.0
    %74 = vmatpush1.msra.mxu0 %v50
    %75 = vmatprep.subr.mxu0 0.0
    %76 = vmatpush1.msra.mxu0 %v51
    %77 = vmatprep.subr.mxu0 0.0
    %78 = vmatpush1.msra.mxu0 %v52
    %79 = vmatprep.subr.mxu0 0.0
    %80 = vmatpush1.msra.mxu0 %v53
    %81 = vmatprep.subr.mxu0 0.0
    %82 = vmatpush1.msra.mxu0 %v54
    %83 = vmatprep.subr.mxu0 0.0
    %84 = vmatpush1.msra.mxu0 %v55
    %85 = vmatprep.subr.mxu0 0.0
    %86 = vmatpush1.msra.mxu0 %v56
    %87 = vmatprep.subr.mxu0 0.0
    %88 = vmatpush1.msra.mxu0 %v57
    %89 = vmatprep.subr.mxu0 0.0
    %90 = vmatpush1.msra.mxu0 %v58
    %91 = vmatprep.subr.mxu0 0.0
    %92 = vmatpush1.msra.mxu0 %v59
    %93 = vmatprep.subr.mxu0 0.0
    %94 = vmatpush1.msra.mxu0 %v60
    %95 = vmatprep.subr.mxu0 0.0
    %96 = vmatpush1.msra.mxu0 %v61
    %97 = vmatprep.subr.mxu0 0.0
    %98 = vmatpush1.msra.mxu0 %v62
    %99 = vmatprep.subr.mxu0 0.0
    %100 = vmatpush1.msra.mxu0 %v63
    %101 = vmatprep.subr.mxu0 0.0
    %102 = vmatpush1.msra.mxu0 %v64
    %103 = vmatprep.subr.mxu0 0.0
    %104 = vmatpush1.msra.mxu0 %v65
    %105 = vmatprep.subr.mxu0 0.0
    %106 = vmatpush1.msra.mxu0 0.0
    %107 = vmatprep.subr.mxu0 0.0
    %108 = vmatpush1.msra.mxu0 0.0
    %109 = vmatprep.subr.mxu0 0.0
    %110 = vmatpush1.msra.mxu0 0.0
    %111 = vmatprep.subr.mxu0 0.0
    %112 = vmatpush1.msra.mxu0 0.0
    %113 = vmatprep.subr.mxu0 0.0
    %114 = vmatpush1.msra.mxu0 0.0
    %115 = vmatprep.subr.mxu0 0.0
    %116 = vmatpush1.msra.mxu0 0.0
    %117 = vmatprep.subr.mxu0 0.0
    %118 = vmatpush1.msra.mxu0 0.0
    %119 = vmatprep.subr.mxu0 0.0
    %120 = vmatpush1.msra.mxu0 0.0
    %121 = vmatprep.subr.mxu0 0.0
    %122 = vmatpush1.msra.mxu0 0.0
    %123 = vmatprep.subr.mxu0 0.0
    %124 = vmatpush1.msra.mxu0 0.0
    %125 = vmatprep.subr.mxu0 0.0
    %126 = vmatpush1.msra.mxu0 0.0
    %127 = vmatprep.subr.mxu0 0.0
    %128 = vmatpush1.msra.mxu0 0.0
    %129 = vmatprep.subr.mxu0 0.0
    %130 = vmatpush1.msra.mxu0 0.0
    %131 = vmatprep.subr.mxu0 0.0
    %132 = vmatpush1.msra.mxu0 0.0
    %133 = vmatprep.subr.mxu0 0.0
    %134 = vmatpush1.msra.mxu0 0.0
    %135 = vmatprep.subr.mxu0 0.0
    %136 = vmatpush1.msra.mxu0 0.0
    %137 = vmatprep.mubr.f32.mxu0 0.0
    %138 = vmatmul.mubr.f32.gmra.mrb[0].mxu0 %v49
    %v139 = vpop.f32.mrb[0].mxu0
    %v140 = vadd.f32 %v71, %v139
    %v141 = vpop.f32.mrb[0].mxu0
    %142 = vdwg.mxu0
    %v143 = vmax.f32 %v140, 0.0
    %v144 = vld [vmem:[#allocation5] sm:$0xff]
    %v145 = vld [vmem:[#allocation5 + $0x8] sm:$0xff]
    %v146 = vld [vmem:[#allocation5 + $0x10] sm:$0xff]
    %v147 = vld [vmem:[#allocation5 + $0x18] sm:$0xff]
    %v148 = vld [vmem:[#allocation5 + $0x20] sm:$0xff]
    %v149 = vld [vmem:[#allocation5 + $0x28] sm:$0xff]
    %v150 = vld [vmem:[#allocation5 + $0x30] sm:$0xff]
    %v151 = vld [vmem:[#allocation5 + $0x38] sm:$0xff]
    %v152 = vld [vmem:[#allocation5 + $0x40] sm:$0xff]
    %v153 = vld [vmem:[#allocation5 + $0x48] sm:$0xff]
    %v154 = vld [vmem:[#allocation5 + $0x50] sm:$0xff]
    %v155 = vld [vmem:[#allocation5 + $0x58] sm:$0xff]
    %v156 = vld [vmem:[#allocation5 + $0x60] sm:$0xff]
    %v157 = vld [vmem:[#allocation5 + $0x68] sm:$0xff]
    %v158 = vld [vmem:[#allocation5 + $0x70] sm:$0xff]
    %v159 = vld [vmem:[#allocation5 + $0x78] sm:$0xff]
    %v160 = vld [vmem:[%s4] sm:$0x1]
    %v162 = vlaneseq
    %v163 = vshrl.u32 %v162, 7
    %v164 = vsub.s32 0, %v163
    %v165 = vrot.slane %v160, %v164
    %167 = vmatprep.subr.mxu0 0.0
    %168 = vmatpush1.msra.mxu0 %v144
    %169 = vmatprep.subr.mxu0 0.0
    %170 = vmatpush1.msra.mxu0 %v145
    %171 = vmatprep.subr.mxu0 0.0
    %172 = vmatpush1.msra.mxu0 %v146
    %173 = vmatprep.subr.mxu0 0.0
    %174 = vmatpush1.msra.mxu0 %v147
    %175 = vmatprep.subr.mxu0 0.0
    %176 = vmatpush1.msra.mxu0 %v148
    %177 = vmatprep.subr.mxu0 0.0
    %178 = vmatpush1.msra.mxu0 %v149
    %179 = vmatprep.subr.mxu0 0.0
    %180 = vmatpush1.msra.mxu0 %v150
    %181 = vmatprep.subr.mxu0 0.0
    %182 = vmatpush1.msra.mxu0 %v151
    %183 = vmatprep.subr.mxu0 0.0
    %184 = vmatpush1.msra.mxu0 %v152
    %185 = vmatprep.subr.mxu0 0.0
    %186 = vmatpush1.msra.mxu0 %v153
    %187 = vmatprep.subr.mxu0 0.0
    %188 = vmatpush1.msra.mxu0 %v154
    %189 = vmatprep.subr.mxu0 0.0
    %190 = vmatpush1.msra.mxu0 %v155
    %191 = vmatprep.subr.mxu0 0.0
    %192 = vmatpush1.msra.mxu0 %v156
    %193 = vmatprep.subr.mxu0 0.0
    %194 = vmatpush1.msra.mxu0 %v157
    %195 = vmatprep.subr.mxu0 0.0
    %196 = vmatpush1.msra.mxu0 %v158
    %197 = vmatprep.subr.mxu0 0.0
    %198 = vmatpush1.msra.mxu0 %v159
    %199 = vmatprep.subr.mxu0 0.0
    %200 = vmatpush1.msra.mxu0 0.0
    %201 = vmatprep.subr.mxu0 0.0
    %202 = vmatpush1.msra.mxu0 0.0
    %203 = vmatprep.subr.mxu0 0.0
    %204 = vmatpush1.msra.mxu0 0.0
    %205 = vmatprep.subr.mxu0 0.0
    %206 = vmatpush1.msra.mxu0 0.0
    %207 = vmatprep.subr.mxu0 0.0
    %208 = vmatpush1.msra.mxu0 0.0
    %209 = vmatprep.subr.mxu0 0.0
    %210 = vmatpush1.msra.mxu0 0.0
    %211 = vmatprep.subr.mxu0 0.0
    %212 = vmatpush1.msra.mxu0 0.0
    %213 = vmatprep.subr.mxu0 0.0
    %214 = vmatpush1.msra.mxu0 0.0
    %215 = vmatprep.subr.mxu0 0.0
    %216 = vmatpush1.msra.mxu0 0.0
    %217 = vmatprep.subr.mxu0 0.0
    %218 = vmatpush1.msra.mxu0 0.0
    %219 = vmatprep.subr.mxu0 0.0
    %220 = vmatpush1.msra.mxu0 0.0
    %221 = vmatprep.subr.mxu0 0.0
    %222 = vmatpush1.msra.mxu0 0.0
    %223 = vmatprep.subr.mxu0 0.0
    %224 = vmatpush1.msra.mxu0 0.0
    %225 = vmatprep.subr.mxu0 0.0
    %226 = vmatpush1.msra.mxu0 0.0
    %227 = vmatprep.subr.mxu0 0.0
    %228 = vmatpush1.msra.mxu0 0.0
    %229 = vmatprep.subr.mxu0 0.0
    %230 = vmatpush1.msra.mxu0 0.0
    %231 = vmatprep.mubr.f32.mxu0 0.0
    %232 = vmatmul.mubr.f32.gmra.mrb[0].mxu0 %v143
    %v233 = vpop.f32.mrb[0].mxu0
    %v234 = vadd.f32 %v165, %v233
    %v235 = vpop.f32.mrb[0].mxu0
    %236 = vdwg.mxu0
    %v237 = vmax.f32 %v234, 0.0
    %238 = vst [vmem:[#allocation7] sm:$0xff] %v237
    // Predicated region
    $region30: #{dnn_forward.1} parent=1 // pred_check
      _
    $region31: #{dnn_forward.1} parent=1 // pred_check_branch
      %240 = sbr.rel (0) target = $region33
    $region32: #{dnn_forward.1} parent=1 // pred_region
      %s242 = ssub.s32 128, 128
      %243 = vsyncadd [#allocation4], %s242
      %s245 = sshll.u32 [#allocation7], 4
      %s246 = int_to_ptr.vmem [resolvable:$true] %s245
      %248 = dma.vmem_to_hbm [thread:$0]  %s246, 128, %s5, [#allocation4]
    $region33: #{dnn_forward.1} parent=1 // pred_fallthru
      _
    // Predicated region
    $region34: #{dnn_forward.1} parent=1 // pred_check
      _
    $region35: #{dnn_forward.1} parent=1 // pred_check_branch
      %250 = sbr.rel (0) target = $region37
    $region36: #{dnn_forward.1} parent=1 // pred_region
      %251 = dma.done [#allocation4], 128
    $region37: #{dnn_forward.1} parent=1 // pred_fallthru
      _
    %252 = vsyncpa [#allocation3], 1
    %253 = vsyncpa [#allocation6], 1
    %254 = vsyncpa [#allocation4], 1

</llo_original>
